<compile_context>
chip_gen: v6e
topology: v6e:2x2x1
jax: 0.10.0
libtpu: 0.0.40
codegen_flags: <defaults>
</compile_context>

<pallas_src>
import math

import numpy as np
import jax
import jax.numpy as jnp
from jax.experimental import pallas as pl
from jax.experimental.pallas import tpu as pltpu


# ---------------------------------------------------------------------------
# Deterministic parameter construction (mirrors gaussian() / create_window()).
# ---------------------------------------------------------------------------
def gaussian_1d(window_size: int, sigma: float = 1.5) -> np.ndarray:
    g = np.array(
        [math.exp(-((x - window_size // 2) ** 2) / float(2 * sigma ** 2))
         for x in range(window_size)],
        dtype=np.float32,
    )
    return (g / g.sum()).astype(np.float32)


def _banded_conv_matrix(n: int, g: np.ndarray, transpose: bool) -> np.ndarray:
    """(n, n) matrix implementing a zero-padded 1-D correlation with taps g.

    transpose=False:  (M @ x)[i]  = sum_h M[i, h] x[h]    (apply along sublane axis)
    transpose=True :  (x @ M)[w'] = sum_w x[w]  M[w, w']  (apply along lane axis)
    Zero padding of width len(g)//2 is encoded by the band boundaries.
    """
    ws = g.shape[0]
    pad = ws // 2
    m = np.zeros((n, n), np.float32)
    for i in range(n):
        for h in range(n):
            k = h - i + pad
            if 0 <= k < ws:
                m[i, h] = g[k]
    return m.T if transpose else m


def _block_diag(block: np.ndarray, reps: int) -> np.ndarray:
    n = block.shape[0]
    out = np.zeros((n * reps, n * reps), np.float32)
    for r in range(reps):
        out[r * n:(r + 1) * n, r * n:(r + 1) * n] = block
    return out


def _choose_tiling(C: int, W: int, max_lt: int = 512):
    """Pick channels-per-tile `ct` and per-channel padded width `wp` such that
    ct divides C and ct*wp is a multiple of 128 (lane-dense tiles).

    Preference: zero lane padding, then fewest grid steps (biggest tile <= max_lt).
    The ct=1 option is always kept as a fallback (its lt may exceed max_lt for huge W).
    """
    best = None
    for ct in range(1, C + 1):
        if C % ct:
            continue
        step = 128 // math.gcd(ct, 128)
        wp = ((W + step - 1) // step) * step
        lt = ct * wp
        if lt > max_lt and ct > 1:
            continue
        key = (wp - W, C // ct, lt)   # min padding, then fewest grid steps
        if best is None or key < best[0]:
            best = (key, ct, wp)
    # TODO(synk): for very wide single-channel rows (W >> max_lt) also tile W with a
    # (window_size-1) lane halo instead of one giant lane tile.
    return best[1], best[2]


# ---------------------------------------------------------------------------
# Pallas kernel
# ---------------------------------------------------------------------------
def _ssim_kernel(x1_ref, x2_ref, bh_ref, bw_ref, out_ref):
    # x*_ref : (H, LT)  lane-dense channel tile of the (H, C*Wp) images.
    # bh_ref : (H, H)   vertical (H-axis) banded Gaussian.
    # bw_ref : (LT, LT) block-diag (per channel) horizontal (W-axis) banded Gaussian.
    # out_ref: (1, LT)  this tile's per-lane partial sums of the SSIM map.
    x1 = x1_ref[...]
    x2 = x2_ref[...]
    bh = bh_ref[...]
    bw = bw_ref[...]

    def blur(m):
        # Separable zero-padded Gaussian: both 1-D passes on the MXU, default
        # (single bf16 pass) precision with f32 accumulation.
        y = jnp.dot(m, bw, preferred_element_type=jnp.float32)    # W axis (lanes)
        return jnp.dot(bh, y, preferred_element_type=jnp.float32)  # H axis (sublanes)

    mu1 = blur(x1)
    mu2 = blur(x2)
    e11 = blur(x1 * x1)
    e22 = blur(x2 * x2)
    e12 = blur(x1 * x2)

    mu1_sq = mu1 * mu1
    mu2_sq = mu2 * mu2
    mu1_mu2 = mu1 * mu2
    sigma1_sq = e11 - mu1_sq
    sigma2_sq = e22 - mu2_sq
    sigma12 = e12 - mu1_mu2

    c1 = 0.01 ** 2
    c2 = 0.03 ** 2
    ssim_map = ((2.0 * mu1_mu2 + c1) * (2.0 * sigma12 + c2)) / (
        (mu1_sq + mu2_sq + c1) * (sigma1_sq + sigma2_sq + c2))

    # Per-lane partial sums over H; the cross-tile reduction happens in the wrapper
    # so each grid step writes a disjoint lane block (megacore-parallel friendly).
    out_ref[...] = jnp.sum(ssim_map, axis=0, keepdims=True)


def ssim_pallas(img1: jax.Array, img2: jax.Array,
                window_size: int = 11, sigma: float = 1.5) -> jax.Array:
    assert img1.shape == img2.shape and img1.ndim == 3
    C, H, W = img1.shape

    ct, wp = _choose_tiling(C, W)
    lt = ct * wp
    num_tiles = C // ct

    g = gaussian_1d(window_size, sigma)
    bh = jnp.asarray(_banded_conv_matrix(H, g, transpose=False))                    # (H, H)
    bw = jnp.asarray(_block_diag(_banded_conv_matrix(wp, g, transpose=True), ct))   # (lt, lt)

    x1 = img1.astype(jnp.float32)
    x2 = img2.astype(jnp.float32)
    if wp != W:
        # Per-channel lane padding to reach a 128-multiple lane tile. Padded lanes
        # only ever receive zeros (zero padding of the conv is unchanged for real
        # lanes) and are masked out of the reduction below.
        pad = [(0, 0), (0, 0), (0, wp - W)]
        x1 = jnp.pad(x1, pad)
        x2 = jnp.pad(x2, pad)

    # Lane-dense layout: (C, H, Wp) -> (H, C*Wp).  Pure layout glue outside the kernel.
    # TODO(synk): fuse this relayout into the producer (allow_input_fusion) to avoid an
    # extra HBM round trip of both images.
    x1 = jnp.transpose(x1, (1, 0, 2)).reshape(H, C * wp)
    x2 = jnp.transpose(x2, (1, 0, 2)).reshape(H, C * wp)

    partial = pl.pallas_call(
        _ssim_kernel,
        grid=(num_tiles,),
        in_specs=[
            pl.BlockSpec((H, lt), lambda i: (0, i)),      # img1 channel tile
            pl.BlockSpec((H, lt), lambda i: (0, i)),      # img2 channel tile
            # Constant conv matrices (index_map constant across the grid).
            # TODO(synk): mark single-buffered (pipeline_mode=pl.Buffered(1)) to halve
            # their VMEM footprint once that path is needed for larger shapes.
            pl.BlockSpec((H, H), lambda i: (0, 0)),       # vertical band   (H, H)
            pl.BlockSpec((lt, lt), lambda i: (0, 0)),     # horizontal band (lt, lt)
        ],
        # Each tile writes its own lane block of a single partial-sum row.
        out_specs=pl.BlockSpec((1, lt), lambda i: (0, i)),
        out_shape=jax.ShapeDtypeStruct((1, C * wp), jnp.float32),
        compiler_params=pltpu.CompilerParams(
            dimension_semantics=("parallel",)),
    )(x1, x2, bh, bw)

    # Mask padded lanes, then size_average=True global mean -> scalar.
    # TODO(synk): size_average=False branch not implemented (not executable for the
    # 3-D inputs this module's forward accepts anyway).
    per_channel = partial.reshape(C, wp)[:, :W]
    return jnp.sum(per_channel) / (C * H * W)


# ---------------------------------------------------------------------------
# Pure-JAX reference (for a correctness check against the original conv2d form)
# ---------------------------------------------------------------------------
def ssim_ref(img1, img2, window_size=11, sigma=1.5):
    C = img1.shape[0]
    pad = window_size // 2
    g = jnp.asarray(gaussian_1d(window_size, sigma))
    w2d = jnp.outer(g, g)
    w = jnp.broadcast_to(w2d, (C, 1, window_size, window_size)).astype(jnp.float32)

    def conv(x):
        return jax.lax.conv_general_dilated(
            x[None].astype(jnp.float32), w, (1, 1), [(pad, pad), (pad, pad)],
            feature_group_count=C,
            dimension_numbers=("NCHW", "OIHW", "NCHW"),
            precision=jax.lax.Precision.HIGHEST)[0]

    mu1, mu2 = conv(img1), conv(img2)
    mu1_sq, mu2_sq, mu1_mu2 = mu1 * mu1, mu2 * mu2, mu1 * mu2
    sigma1_sq = conv(img1 * img1) - mu1_sq
    sigma2_sq = conv(img2 * img2) - mu2_sq
    sigma12 = conv(img1 * img2) - mu1_mu2
    c1, c2 = 0.01 ** 2, 0.03 ** 2
    ssim_map = ((2 * mu1_mu2 + c1) * (2 * sigma12 + c2)) / (
        (mu1_sq + mu2_sq + c1) * (sigma1_sq + sigma2_sq + c2))
    return jnp.mean(ssim_map)


if __name__ == "__main__":
    window_size = 11
    # C == W is required for the original PyTorch forward to execute (channel is
    # read from dim 2 of a CHW input but used as the conv group count).
    C, H, W = 16, 16, 16

    key = jax.random.PRNGKey(0)
    k1, k2 = jax.random.split(key)
    img1 = jax.random.uniform(k1, (C, H, W), dtype=jnp.float32)
    noise = jax.random.uniform(k2, (C, H, W), dtype=jnp.float32)
    # Correlated pair (typical SSIM usage: prediction vs. target); avoids the
    # ill-conditioned near-zero-covariance regime under bf16-pass MXU precision.
    img2 = 0.8 * img1 + 0.2 * noise

    result = jax.block_until_ready(ssim_pallas(img1, img2, window_size))
    expected = jax.block_until_ready(ssim_ref(img1, img2, window_size))
    # Kernel matmuls run at default (bf16-pass) MXU precision with f32 accumulation;
    # reference is HIGHEST precision, so compare with a correspondingly looser rtol.
    np.testing.assert_allclose(np.asarray(result), np.asarray(expected),
                               rtol=2e-2, atol=2e-4)

    print("KERNEL_OK")
</pallas_src>

<mosaic_0001>
module attributes {stable_mosaic.version = 11 : i64} {
  func.func @_ssim_kernel(%arg0: i32, %arg1: memref<16x256xf32, #tpu.memory_space<vmem>>, %arg2: memref<16x256xf32, #tpu.memory_space<vmem>>, %arg3: memref<16x16xf32, #tpu.memory_space<vmem>>, %arg4: memref<256x256xf32, #tpu.memory_space<vmem>>, %arg5: memref<1x256xf32, #tpu.memory_space<vmem>>) attributes {dimension_semantics = [#tpu.dimension_semantics<parallel>], iteration_bounds = array<i64: 1>, scalar_prefetch = 0 : i64, scratch_operands = 0 : i64, tpu.core_type = #tpu.core_type<tc>, window_params = [{transform_indices = @transform_0, window_bounds = array<i64: 16, 256>}, {transform_indices = @transform_1, window_bounds = array<i64: 16, 256>}, {pipeline_mode = #tpu.pipeline_mode<synchronous>, transform_indices = @transform_2, window_bounds = array<i64: 16, 16>}, {pipeline_mode = #tpu.pipeline_mode<synchronous>, transform_indices = @transform_3, window_bounds = array<i64: 256, 256>}, {transform_indices = @transform_4, window_bounds = array<i64: 1, 256>}]} {
    %c0 = arith.constant 0 : index
    %c0_0 = arith.constant 0 : index
    %0 = vector.load %arg1[%c0, %c0_0] : memref<16x256xf32, #tpu.memory_space<vmem>>, vector<16x256xf32>
    %c0_1 = arith.constant 0 : index
    %c0_2 = arith.constant 0 : index
    %1 = vector.load %arg2[%c0_1, %c0_2] : memref<16x256xf32, #tpu.memory_space<vmem>>, vector<16x256xf32>
    %c0_3 = arith.constant 0 : index
    %c0_4 = arith.constant 0 : index
    %2 = vector.load %arg3[%c0_3, %c0_4] : memref<16x16xf32, #tpu.memory_space<vmem>>, vector<16x16xf32>
    %c0_5 = arith.constant 0 : index
    %c0_6 = arith.constant 0 : index
    %3 = vector.load %arg4[%c0_5, %c0_6] : memref<256x256xf32, #tpu.memory_space<vmem>>, vector<256x256xf32>
    %cst = arith.constant dense<0.000000e+00> : vector<16x256xf32>
    %4 = tpu.matmul %0, %3, %cst {dimension_numbers = #tpu.dot_dimension_numbers<[1], [0], [0], [1], [0, 0, 1, 1], [], []>} : vector<16x256xf32>, vector<256x256xf32>, vector<16x256xf32> -> vector<16x256xf32>
    %cst_7 = arith.constant dense<0.000000e+00> : vector<16x256xf32>
    %5 = tpu.matmul %2, %4, %cst_7 {dimension_numbers = #tpu.dot_dimension_numbers<[1], [0], [0], [1], [0, 0, 1, 1], [], []>} : vector<16x16xf32>, vector<16x256xf32>, vector<16x256xf32> -> vector<16x256xf32>
    %cst_8 = arith.constant dense<0.000000e+00> : vector<16x256xf32>
    %6 = tpu.matmul %1, %3, %cst_8 {dimension_numbers = #tpu.dot_dimension_numbers<[1], [0], [0], [1], [0, 0, 1, 1], [], []>} : vector<16x256xf32>, vector<256x256xf32>, vector<16x256xf32> -> vector<16x256xf32>
    %cst_9 = arith.constant dense<0.000000e+00> : vector<16x256xf32>
    %7 = tpu.matmul %2, %6, %cst_9 {dimension_numbers = #tpu.dot_dimension_numbers<[1], [0], [0], [1], [0, 0, 1, 1], [], []>} : vector<16x16xf32>, vector<16x256xf32>, vector<16x256xf32> -> vector<16x256xf32>
    %8 = arith.mulf %0, %0 : vector<16x256xf32>
    %cst_10 = arith.constant dense<0.000000e+00> : vector<16x256xf32>
    %9 = tpu.matmul %8, %3, %cst_10 {dimension_numbers = #tpu.dot_dimension_numbers<[1], [0], [0], [1], [0, 0, 1, 1], [], []>} : vector<16x256xf32>, vector<256x256xf32>, vector<16x256xf32> -> vector<16x256xf32>
    %cst_11 = arith.constant dense<0.000000e+00> : vector<16x256xf32>
    %10 = tpu.matmul %2, %9, %cst_11 {dimension_numbers = #tpu.dot_dimension_numbers<[1], [0], [0], [1], [0, 0, 1, 1], [], []>} : vector<16x16xf32>, vector<16x256xf32>, vector<16x256xf32> -> vector<16x256xf32>
    %11 = arith.mulf %1, %1 : vector<16x256xf32>
    %cst_12 = arith.constant dense<0.000000e+00> : vector<16x256xf32>
    %12 = tpu.matmul %11, %3, %cst_12 {dimension_numbers = #tpu.dot_dimension_numbers<[1], [0], [0], [1], [0, 0, 1, 1], [], []>} : vector<16x256xf32>, vector<256x256xf32>, vector<16x256xf32> -> vector<16x256xf32>
    %cst_13 = arith.constant dense<0.000000e+00> : vector<16x256xf32>
    %13 = tpu.matmul %2, %12, %cst_13 {dimension_numbers = #tpu.dot_dimension_numbers<[1], [0], [0], [1], [0, 0, 1, 1], [], []>} : vector<16x16xf32>, vector<16x256xf32>, vector<16x256xf32> -> vector<16x256xf32>
    %14 = arith.mulf %0, %1 : vector<16x256xf32>
    %cst_14 = arith.constant dense<0.000000e+00> : vector<16x256xf32>
    %15 = tpu.matmul %14, %3, %cst_14 {dimension_numbers = #tpu.dot_dimension_numbers<[1], [0], [0], [1], [0, 0, 1, 1], [], []>} : vector<16x256xf32>, vector<256x256xf32>, vector<16x256xf32> -> vector<16x256xf32>
    %cst_15 = arith.constant dense<0.000000e+00> : vector<16x256xf32>
    %16 = tpu.matmul %2, %15, %cst_15 {dimension_numbers = #tpu.dot_dimension_numbers<[1], [0], [0], [1], [0, 0, 1, 1], [], []>} : vector<16x16xf32>, vector<16x256xf32>, vector<16x256xf32> -> vector<16x256xf32>
    %17 = arith.mulf %5, %5 : vector<16x256xf32>
    %18 = arith.mulf %7, %7 : vector<16x256xf32>
    %19 = arith.mulf %5, %7 : vector<16x256xf32>
    %20 = arith.subf %10, %17 : vector<16x256xf32>
    %21 = arith.subf %13, %18 : vector<16x256xf32>
    %22 = arith.subf %16, %19 : vector<16x256xf32>
    %cst_16 = arith.constant 2.000000e+00 : f32
    %23 = vector.broadcast %cst_16 : f32 to vector<16x256xf32>
    %24 = arith.mulf %23, %19 : vector<16x256xf32>
    %cst_17 = arith.constant 9.99999974E-5 : f32
    %25 = vector.broadcast %cst_17 : f32 to vector<16x256xf32>
    %26 = arith.addf %24, %25 : vector<16x256xf32>
    %cst_18 = arith.constant 2.000000e+00 : f32
    %27 = vector.broadcast %cst_18 : f32 to vector<16x256xf32>
    %28 = arith.mulf %27, %22 : vector<16x256xf32>
    %cst_19 = arith.constant 8.99999984E-4 : f32
    %29 = vector.broadcast %cst_19 : f32 to vector<16x256xf32>
    %30 = arith.addf %28, %29 : vector<16x256xf32>
    %31 = arith.mulf %26, %30 : vector<16x256xf32>
    %32 = arith.addf %17, %18 : vector<16x256xf32>
    %cst_20 = arith.constant 9.99999974E-5 : f32
    %33 = vector.broadcast %cst_20 : f32 to vector<16x256xf32>
    %34 = arith.addf %32, %33 : vector<16x256xf32>
    %35 = arith.addf %20, %21 : vector<16x256xf32>
    %cst_21 = arith.constant 8.99999984E-4 : f32
    %36 = vector.broadcast %cst_21 : f32 to vector<16x256xf32>
    %37 = arith.addf %35, %36 : vector<16x256xf32>
    %38 = arith.mulf %34, %37 : vector<16x256xf32>
    %39 = arith.divf %31, %38 : vector<16x256xf32>
    %cst_22 = arith.constant dense<0.000000e+00> : vector<256xf32>
    %40 = vector.multi_reduction <add>, %39, %cst_22 [0] : vector<16x256xf32> to vector<256xf32>
    %41 = vector.shape_cast %40 : vector<256xf32> to vector<1x256xf32>
    %c0_23 = arith.constant 0 : index
    %c0_24 = arith.constant 0 : index
    %42 = vector.load %arg5[%c0_23, %c0_24] : memref<1x256xf32, #tpu.memory_space<vmem>>, vector<1x256xf32>
    tpu.vector_store %arg5[%c0_23, %c0_24], %41 {strides = array<i32>} : memref<1x256xf32, #tpu.memory_space<vmem>>, vector<1x256xf32>,
    return
  }
  func.func @transform_0(%arg0: i32) -> (i32, i32) {
    %c0_i32 = arith.constant 0 : i32
    %c0_i32_0 = arith.constant 0 : i32
    return %c0_i32, %arg0 : i32, i32
  }
  func.func @transform_1(%arg0: i32) -> (i32, i32) {
    %c0_i32 = arith.constant 0 : i32
    %c0_i32_0 = arith.constant 0 : i32
    return %c0_i32, %arg0 : i32, i32
  }
  func.func @transform_2(%arg0: i32) -> (i32, i32) {
    %c0_i32 = arith.constant 0 : i32
    %c0_i32_0 = arith.constant 0 : i32
    %c0_i32_1 = arith.constant 0 : i32
    return %c0_i32, %c0_i32_0 : i32, i32
  }
  func.func @transform_3(%arg0: i32) -> (i32, i32) {
    %c0_i32 = arith.constant 0 : i32
    %c0_i32_0 = arith.constant 0 : i32
    %c0_i32_1 = arith.constant 0 : i32
    return %c0_i32, %c0_i32_0 : i32, i32
  }
  func.func @transform_4(%arg0: i32) -> (i32, i32) {
    %c0_i32 = arith.constant 0 : i32
    %c0_i32_0 = arith.constant 0 : i32
    return %c0_i32, %arg0 : i32, i32
  }
}

</mosaic_0001>

<llo_original>
// kernel: tpu_custom_call.1
$region0: #{tpu_custom_call.1}
  #allocation0 [shape = 'u32[]', space=smem, size = 0x4, offset = 0x4, fixed_abs, tag = 'smem constant byte address 0x4 - core index']
  #allocation1 [shape = 'u32[144,128]{1,0:T(1,128)}', space=vmem, size = 0x12000, scoped, tag = 'internal scratch']
  %s0 = inlined_call_operand.hbm [shape: f32[16,256], index: 0, kind: input, shape index: {}]
  %s1 = inlined_call_operand.hbm [shape: f32[16,256], index: 1, kind: input, shape index: {}]
  %s2 = inlined_call_operand.hbm [shape: f32[16,16], index: 2, kind: input, shape index: {}]
  %s3 = inlined_call_operand.hbm [shape: f32[256,256], index: 3, kind: input, shape index: {}]
  %s4 = inlined_call_operand.hbm [shape: f32[1,256], index: 4, kind: output, shape index: {}]
  %s5 = sld [smem:[#allocation0]]
  $region42: #{tpu_custom_call.1} parent=0
    _
  %s7 = ssub.s32 1, %s5
  %s8 = scalar_select 0, %s7, %s5
  $region1: #{tpu_custom_call.1} parent=0
    #allocation2 [shape = 'u8[16384]{0}', space=vmem, size = 0x4000, scoped, tag = 'input window, operand 0, single buffered']
    #allocation3 [shape = 's32[1]{0}', space=sflag, size = 0x4, scoped, tag = 'scoped memory for tpu_custom_call.1']
    #allocation4 [shape = 's32[1]{0}', space=sflag, size = 0x4, scoped, tag = 'scoped memory for tpu_custom_call.1']
    #allocation5 [shape = 'u8[16384]{0}', space=vmem, size = 0x4000, scoped, tag = 'input window, operand 1, single buffered']
    #allocation6 [shape = 's32[1]{0}', space=sflag, size = 0x4, scoped, tag = 'scoped memory for tpu_custom_call.1']
    #allocation7 [shape = 'u8[8192]{0}', space=vmem, size = 0x2000, scoped, tag = 'input window, operand 2, single buffered']
    #allocation8 [shape = 'u8[262144]{0}', space=vmem, size = 0x40000, scoped, tag = 'input window, operand 3, single buffered']
    #allocation9 [shape = 's32[1]{0}', space=sflag, size = 0x4, scoped, tag = 'scoped memory for tpu_custom_call.1']
    #allocation10 [shape = 'u8[1024]{0}', space=vmem, size = 0x400, scoped, tag = 'output window, operand 0, single buffered']
    %9 = vsyncpa [#allocation3], 0
    %10 = vsyncpa [#allocation6], 0
    %11 = vsyncpa [#allocation9], 0
    %12 = vsyncpa [#allocation4], 0
    // Predicated region
    $region2: #{tpu_custom_call.1} parent=1 // pred_check
      _
    $region3: #{tpu_custom_call.1} parent=1 // pred_check_branch
      %14 = sbr.rel (0) target = $region5
    $region4: #{tpu_custom_call.1} parent=1 // pred_region
      %s16 = ssub.s32 512, 512
      %17 = vsyncadd [#allocation3], %s16
      %s18 = sshll.u32 [#allocation2], 4
      %s19 = int_to_ptr.vmem [resolvable:$true] %s18
      %24 = dma.hbm_to_vmem [thread:$0]  %s0, 512, %s19, [#allocation3], 256, 256, 16
    $region5: #{tpu_custom_call.1} parent=1 // pred_fallthru
      _
    // Predicated region
    $region6: #{tpu_custom_call.1} parent=1 // pred_check
      _
    $region7: #{tpu_custom_call.1} parent=1 // pred_check_branch
      %26 = sbr.rel (0) target = $region9
    $region8: #{tpu_custom_call.1} parent=1 // pred_region
      %s28 = ssub.s32 512, 512
      %29 = vsyncadd [#allocation6], %s28
      %s30 = sshll.u32 [#allocation5], 4
      %s31 = int_to_ptr.vmem [resolvable:$true] %s30
      %36 = dma.hbm_to_vmem [thread:$0]  %s1, 512, %s31, [#allocation6], 256, 256, 16
    $region9: #{tpu_custom_call.1} parent=1 // pred_fallthru
      _
    // Predicated region
    $region10: #{tpu_custom_call.1} parent=1 // pred_check
      _
    $region11: #{tpu_custom_call.1} parent=1 // pred_check_branch
      %38 = sbr.rel (0) target = $region13
    $region12: #{tpu_custom_call.1} parent=1 // pred_region
      %s40 = ssub.s32 256, 256
      %41 = vsyncadd [#allocation6], %s40
      %s42 = sshll.u32 [#allocation7], 4
      %s43 = int_to_ptr.vmem [resolvable:$true] %s42
      %48 = dma.hbm_to_vmem [thread:$0]  %s2, 256, %s43, [#allocation6], 128, 128, 8
    $region13: #{tpu_custom_call.1} parent=1 // pred_fallthru
      _
    // Predicated region
    $region14: #{tpu_custom_call.1} parent=1 // pred_check
      _
    $region15: #{tpu_custom_call.1} parent=1 // pred_check_branch
      %50 = sbr.rel (0) target = $region17
    $region16: #{tpu_custom_call.1} parent=1 // pred_region
      %s52 = ssub.s32 8192, 8192
      %53 = vsyncadd [#allocation9], %s52
      %s54 = sshll.u32 [#allocation8], 4
      %s55 = int_to_ptr.vmem [resolvable:$true] %s54
      %60 = dma.hbm_to_vmem [thread:$0]  %s3, 8192, %s55, [#allocation9], 256, 256, 16
    $region17: #{tpu_custom_call.1} parent=1 // pred_fallthru
      _
    // Predicated region
    $region18: #{tpu_custom_call.1} parent=1 // pred_check
      _
    $region19: #{tpu_custom_call.1} parent=1 // pred_check_branch
      %62 = sbr.rel (0) target = $region21
    $region20: #{tpu_custom_call.1} parent=1 // pred_region
      %63 = dma.done [#allocation3], 512
    $region21: #{tpu_custom_call.1} parent=1 // pred_fallthru
      _
    // Predicated region
    $region22: #{tpu_custom_call.1} parent=1 // pred_check
      _
    $region23: #{tpu_custom_call.1} parent=1 // pred_check_branch
      %65 = sbr.rel (0) target = $region25
    $region24: #{tpu_custom_call.1} parent=1 // pred_region
      %66 = dma.done [#allocation6], 512
    $region25: #{tpu_custom_call.1} parent=1 // pred_fallthru
      _
    // Predicated region
    $region26: #{tpu_custom_call.1} parent=1 // pred_check
      _
    $region27: #{tpu_custom_call.1} parent=1 // pred_check_branch
      %68 = sbr.rel (0) target = $region29
    $region28: #{tpu_custom_call.1} parent=1 // pred_region
      %69 = dma.done [#allocation6], 256
    $region29: #{tpu_custom_call.1} parent=1 // pred_fallthru
      _
    // Predicated region
    $region30: #{tpu_custom_call.1} parent=1 // pred_check
      _
    $region31: #{tpu_custom_call.1} parent=1 // pred_check_branch
      %71 = sbr.rel (0) target = $region33
    $region32: #{tpu_custom_call.1} parent=1 // pred_region
      %72 = dma.done [#allocation9], 8192
    $region33: #{tpu_custom_call.1} parent=1 // pred_fallthru
      _
    %v73 = vld [vmem:[#allocation2] sm:$0xff]
    %v74 = vld [vmem:[#allocation2 + $0x8] sm:$0xff]
    %v75 = vld [vmem:[#allocation2 + $0x10] sm:$0xff]
    %v76 = vld [vmem:[#allocation2 + $0x18] sm:$0xff]
    %v77 = vld [vmem:[#allocation5] sm:$0xff]
    %v78 = vld [vmem:[#allocation5 + $0x8] sm:$0xff]
    %v79 = vld [vmem:[#allocation5 + $0x10] sm:$0xff]
    %v80 = vld [vmem:[#allocation5 + $0x18] sm:$0xff]
    %v81 = vld [vmem:[#allocation7] sm:$0xff]
    %v82 = vld [vmem:[#allocation7 + $0x8] sm:$0xff]
    %v83 = vld [vmem:[#allocation8] sm:$0xff]
    %v84 = vld [vmem:[#allocation8 + $0x8] sm:$0xff]
    %v85 = vld [vmem:[#allocation8 + $0x10] sm:$0xff]
    %v86 = vld [vmem:[#allocation8 + $0x18] sm:$0xff]
    %v87 = vld [vmem:[#allocation8 + $0x20] sm:$0xff]
    %v88 = vld [vmem:[#allocation8 + $0x28] sm:$0xff]
    %v89 = vld [vmem:[#allocation8 + $0x30] sm:$0xff]
    %v90 = vld [vmem:[#allocation8 + $0x38] sm:$0xff]
    %v91 = vld [vmem:[#allocation8 + $0x40] sm:$0xff]
    %v92 = vld [vmem:[#allocation8 + $0x48] sm:$0xff]
    %v93 = vld [vmem:[#allocation8 + $0x50] sm:$0xff]
    %v94 = vld [vmem:[#allocation8 + $0x58] sm:$0xff]
    %v95 = vld [vmem:[#allocation8 + $0x60] sm:$0xff]
    %v96 = vld [vmem:[#allocation8 + $0x68] sm:$0xff]
    %v97 = vld [vmem:[#allocation8 + $0x70] sm:$0xff]
    %v98 = vld [vmem:[#allocation8 + $0x78] sm:$0xff]
    %v99 = vld [vmem:[#allocation8 + $0x80] sm:$0xff]
    %v100 = vld [vmem:[#allocation8 + $0x88] sm:$0xff]
    %v101 = vld [vmem:[#allocation8 + $0x90] sm:$0xff]
    %v102 = vld [vmem:[#allocation8 + $0x98] sm:$0xff]
    %v103 = vld [vmem:[#allocation8 + $0xa0] sm:$0xff]
    %v104 = vld [vmem:[#allocation8 + $0xa8] sm:$0xff]
    %v105 = vld [vmem:[#allocation8 + $0xb0] sm:$0xff]
    %v106 = vld [vmem:[#allocation8 + $0xb8] sm:$0xff]
    %v107 = vld [vmem:[#allocation8 + $0xc0] sm:$0xff]
    %v108 = vld [vmem:[#allocation8 + $0xc8] sm:$0xff]
    %v109 = vld [vmem:[#allocation8 + $0xd0] sm:$0xff]
    %v110 = vld [vmem:[#allocation8 + $0xd8] sm:$0xff]
    %v111 = vld [vmem:[#allocation8 + $0xe0] sm:$0xff]
    %v112 = vld [vmem:[#allocation8 + $0xe8] sm:$0xff]
    %v113 = vld [vmem:[#allocation8 + $0xf0] sm:$0xff]
    %v114 = vld [vmem:[#allocation8 + $0xf8] sm:$0xff]
    %v115 = vld [vmem:[#allocation8 + $0x100] sm:$0xff]
    %v116 = vld [vmem:[#allocation8 + $0x108] sm:$0xff]
    %v117 = vld [vmem:[#allocation8 + $0x110] sm:$0xff]
    %v118 = vld [vmem:[#allocation8 + $0x118] sm:$0xff]
    %v119 = vld [vmem:[#allocation8 + $0x120] sm:$0xff]
    %v120 = vld [vmem:[#allocation8 + $0x128] sm:$0xff]
    %v121 = vld [vmem:[#allocation8 + $0x130] sm:$0xff]
    %v122 = vld [vmem:[#allocation8 + $0x138] sm:$0xff]
    %v123 = vld [vmem:[#allocation8 + $0x140] sm:$0xff]
    %v124 = vld [vmem:[#allocation8 + $0x148] sm:$0xff]
    %v125 = vld [vmem:[#allocation8 + $0x150] sm:$0xff]
    %v126 = vld [vmem:[#allocation8 + $0x158] sm:$0xff]
    %v127 = vld [vmem:[#allocation8 + $0x160] sm:$0xff]
    %v128 = vld [vmem:[#allocation8 + $0x168] sm:$0xff]
    %v129 = vld [vmem:[#allocation8 + $0x170] sm:$0xff]
    %v130 = vld [vmem:[#allocation8 + $0x178] sm:$0xff]
    %v131 = vld [vmem:[#allocation8 + $0x180] sm:$0xff]
    %v132 = vld [vmem:[#allocation8 + $0x188] sm:$0xff]
    %v133 = vld [vmem:[#allocation8 + $0x190] sm:$0xff]
    %v134 = vld [vmem:[#allocation8 + $0x198] sm:$0xff]
    %v135 = vld [vmem:[#allocation8 + $0x1a0] sm:$0xff]
    %v136 = vld [vmem:[#allocation8 + $0x1a8] sm:$0xff]
    %v137 = vld [vmem:[#allocation8 + $0x1b0] sm:$0xff]
    %v138 = vld [vmem:[#allocation8 + $0x1b8] sm:$0xff]
    %v139 = vld [vmem:[#allocation8 + $0x1c0] sm:$0xff]
    %v140 = vld [vmem:[#allocation8 + $0x1c8] sm:$0xff]
    %v141 = vld [vmem:[#allocation8 + $0x1d0] sm:$0xff]
    %v142 = vld [vmem:[#allocation8 + $0x1d8] sm:$0xff]
    %v143 = vld [vmem:[#allocation8 + $0x1e0] sm:$0xff]
    %v144 = vld [vmem:[#allocation8 + $0x1e8] sm:$0xff]
    %v145 = vld [vmem:[#allocation8 + $0x1f0] sm:$0xff]
    %v146 = vld [vmem:[#allocation8 + $0x1f8] sm:$0xff]
    %147 = vmatprep.subr.mxu0 %v114
    %148 = vmatpush1.msra.mxu0 %v113
    %149 = vmatprep.subr.mxu0 %v112
    %150 = vmatpush1.msra.mxu0 %v111
    %151 = vmatprep.subr.mxu0 %v110
    %152 = vmatpush1.msra.mxu0 %v109
    %153 = vmatprep.subr.mxu0 %v108
    %154 = vmatpush1.msra.mxu0 %v107
    %155 = vmatprep.subr.mxu0 %v106
    %156 = vmatpush1.msra.mxu0 %v105
    %157 = vmatprep.subr.mxu0 %v104
    %158 = vmatpush1.msra.mxu0 %v103
    %159 = vmatprep.subr.mxu0 %v102
    %160 = vmatpush1.msra.mxu0 %v101
    %161 = vmatprep.subr.mxu0 %v100
    %162 = vmatpush1.msra.mxu0 %v99
    %163 = vmatprep.subr.mxu0 %v98
    %164 = vmatpush1.msra.mxu0 %v97
    %165 = vmatprep.subr.mxu0 %v96
    %166 = vmatpush1.msra.mxu0 %v95
    %167 = vmatprep.subr.mxu0 %v94
    %168 = vmatpush1.msra.mxu0 %v93
    %169 = vmatprep.subr.mxu0 %v92
    %170 = vmatpush1.msra.mxu0 %v91
    %171 = vmatprep.subr.mxu0 %v90
    %172 = vmatpush1.msra.mxu0 %v89
    %173 = vmatprep.subr.mxu0 %v88
    %174 = vmatpush1.msra.mxu0 %v87
    %175 = vmatprep.subr.mxu0 %v86
    %176 = vmatpush1.msra.mxu0 %v85
    %177 = vmatprep.subr.mxu0 %v84
    %178 = vmatpush1.msra.mxu0 %v83
    %179 = vmatprep.subr.mxu0 %v146
    %180 = vmatpush2.msra.mxu0 %v145
    %181 = vmatprep.subr.mxu0 %v144
    %182 = vmatpush2.msra.mxu0 %v143
    %183 = vmatprep.subr.mxu0 %v142
    %184 = vmatpush2.msra.mxu0 %v141
    %185 = vmatprep.subr.mxu0 %v140
    %186 = vmatpush2.msra.mxu0 %v139
    %187 = vmatprep.subr.mxu0 %v138
    %188 = vmatpush2.msra.mxu0 %v137
    %189 = vmatprep.subr.mxu0 %v136
    %190 = vmatpush2.msra.mxu0 %v135
    %191 = vmatprep.subr.mxu0 %v134
    %192 = vmatpush2.msra.mxu0 %v133
    %193 = vmatprep.subr.mxu0 %v132
    %194 = vmatpush2.msra.mxu0 %v131
    %195 = vmatprep.subr.mxu0 %v130
    %196 = vmatpush2.msra.mxu0 %v129
    %197 = vmatprep.subr.mxu0 %v128
    %198 = vmatpush2.msra.mxu0 %v127
    %199 = vmatprep.subr.mxu0 %v126
    %200 = vmatpush2.msra.mxu0 %v125
    %201 = vmatprep.subr.mxu0 %v124
    %202 = vmatpush2.msra.mxu0 %v123
    %203 = vmatprep.subr.mxu0 %v122
    %204 = vmatpush2.msra.mxu0 %v121
    %205 = vmatprep.subr.mxu0 %v120
    %206 = vmatpush2.msra.mxu0 %v119
    %207 = vmatprep.subr.mxu0 %v118
    %208 = vmatpush2.msra.mxu0 %v117
    %209 = vmatprep.subr.mxu0 %v116
    %210 = vmatpush2.msra.mxu0 %v115
    %211 = vmatprep.mubr.f32.mxu0 %v74
    %212 = vmatmul.mubr.f32.gmra.mxu0 %v73
    %v213 = vpop.f32.mrf.mxu0
    %v214 = vadd.f32 0.0, %v213
    %v215 = vpop.f32.mrf.mxu0
    %v216 = vadd.f32 0.0, %v215
    %217 = vmatprep.mubr.f32.mxu0 %v76
    %218 = vmatmul.mubr.f32.gmra.mxu0 %v75
    %v219 = vpop.f32.mrf.mxu0
    %v220 = vadd.f32 0.0, %v219
    %v221 = vpop.f32.mrf.mxu0
    %v222 = vadd.f32 0.0, %v221
    %223 = vdwg.mxu0
    %vm224 = vcmask 130048
    %v226 = vsel %vm224, %v81, 0
    %v229 = vsel %vm224, %v82, 0
    %231 = vmatprep.subr.mxu0 0.0
    %232 = vmatpush1.msra.mxu0 0.0
    %233 = vmatprep.subr.mxu0 0.0
    %234 = vmatpush1.msra.mxu0 0.0
    %235 = vmatprep.subr.mxu0 0.0
    %236 = vmatpush1.msra.mxu0 0.0
    %237 = vmatprep.subr.mxu0 0.0
    %238 = vmatpush1.msra.mxu0 0.0
    %239 = vmatprep.subr.mxu0 0.0
    %240 = vmatpush1.msra.mxu0 0.0
    %241 = vmatprep.subr.mxu0 0.0
    %242 = vmatpush1.msra.mxu0 0.0
    %243 = vmatprep.subr.mxu0 0.0
    %244 = vmatpush1.msra.mxu0 0.0
    %245 = vmatprep.subr.mxu0 0.0
    %246 = vmatpush1.msra.mxu0 0.0
    %247 = vmatprep.subr.mxu0 0.0
    %248 = vmatpush1.msra.mxu0 0.0
    %249 = vmatprep.subr.mxu0 0.0
    %250 = vmatpush1.msra.mxu0 0.0
    %251 = vmatprep.subr.mxu0 0.0
    %252 = vmatpush1.msra.mxu0 0.0
    %253 = vmatprep.subr.mxu0 0.0
    %254 = vmatpush1.msra.mxu0 0.0
    %255 = vmatprep.subr.mxu0 0.0
    %256 = vmatpush1.msra.mxu0 0.0
    %257 = vmatprep.subr.mxu0 0.0
    %258 = vmatpush1.msra.mxu0 0.0
    %259 = vmatprep.subr.mxu0 %v222
    %260 = vmatpush1.msra.mxu0 %v220
    %261 = vmatprep.subr.mxu0 %v216
    %262 = vmatpush1.msra.mxu0 %v214
    %263 = vmatprep.subr.mxu0 0.0
    %264 = vmatpush2.msra.mxu0 0.0
    %265 = vmatprep.subr.mxu0 0.0
    %266 = vmatpush2.msra.mxu0 0.0
    %267 = vmatprep.subr.mxu0 0.0
    %268 = vmatpush2.msra.mxu0 0.0
    %269 = vmatprep.subr.mxu0 0.0
    %270 = vmatpush2.msra.mxu0 0.0
    %271 = vmatprep.subr.mxu0 0.0
    %272 = vmatpush2.msra.mxu0 0.0
    %273 = vmatprep.subr.mxu0 0.0
    %274 = vmatpush2.msra.mxu0 0.0
    %275 = vmatprep.subr.mxu0 0.0
    %276 = vmatpush2.msra.mxu0 0.0
    %277 = vmatprep.subr.mxu0 0.0
    %278 = vmatpush2.msra.mxu0 0.0
    %279 = vmatprep.subr.mxu0 0.0
    %280 = vmatpush2.msra.mxu0 0.0
    %281 = vmatprep.subr.mxu0 0.0
    %282 = vmatpush2.msra.mxu0 0.0
    %283 = vmatprep.subr.mxu0 0.0
    %284 = vmatpush2.msra.mxu0 0.0
    %285 = vmatprep.subr.mxu0 0.0
    %286 = vmatpush2.msra.mxu0 0.0
    %287 = vmatprep.subr.mxu0 0.0
    %288 = vmatpush2.msra.mxu0 0.0
    %289 = vmatprep.subr.mxu0 0.0
    %290 = vmatpush2.msra.mxu0 0.0
    %291 = vmatprep.subr.mxu0 0.0
    %292 = vmatpush2.msra.mxu0 0.0
    %293 = vmatprep.subr.mxu0 0.0
    %294 = vmatpush2.msra.mxu0 0.0
    %295 = vmatprep.mubr.f32.mxu0 0.0
    %296 = vmatmul.mubr.f32.gmra.mxu0 %v226
    %v297 = vpop.f32.mrf.mxu0
    %v298 = vadd.f32 0.0, %v297
    %v299 = vpop.f32.mrf.mxu0
    %v300 = vadd.f32 0.0, %v299
    %301 = vmatprep.mubr.f32.mxu0 0.0
    %302 = vmatmul.mubr.f32.gmra.mxu0 %v229
    %v303 = vpop.f32.mrf.mxu0
    %v304 = vadd.f32 0.0, %v303
    %v305 = vpop.f32.mrf.mxu0
    %v306 = vadd.f32 0.0, %v305
    %307 = vdwg.mxu0
    %308 = vmatprep.subr.mxu0 %v114
    %309 = vmatpush1.msra.mxu0 %v113
    %310 = vmatprep.subr.mxu0 %v112
    %311 = vmatpush1.msra.mxu0 %v111
    %312 = vmatprep.subr.mxu0 %v110
    %313 = vmatpush1.msra.mxu0 %v109
    %314 = vmatprep.subr.mxu0 %v108
    %315 = vmatpush1.msra.mxu0 %v107
    %316 = vmatprep.subr.mxu0 %v106
    %317 = vmatpush1.msra.mxu0 %v105
    %318 = vmatprep.subr.mxu0 %v104
    %319 = vmatpush1.msra.mxu0 %v103
    %320 = vmatprep.subr.mxu0 %v102
    %321 = vmatpush1.msra.mxu0 %v101
    %322 = vmatprep.subr.mxu0 %v100
    %323 = vmatpush1.msra.mxu0 %v99
    %324 = vmatprep.subr.mxu0 %v98
    %325 = vmatpush1.msra.mxu0 %v97
    %326 = vmatprep.subr.mxu0 %v96
    %327 = vmatpush1.msra.mxu0 %v95
    %328 = vmatprep.subr.mxu0 %v94
    %329 = vmatpush1.msra.mxu0 %v93
    %330 = vmatprep.subr.mxu0 %v92
    %331 = vmatpush1.msra.mxu0 %v91
    %332 = vmatprep.subr.mxu0 %v90
    %333 = vmatpush1.msra.mxu0 %v89
    %334 = vmatprep.subr.mxu0 %v88
    %335 = vmatpush1.msra.mxu0 %v87
    %336 = vmatprep.subr.mxu0 %v86
    %337 = vmatpush1.msra.mxu0 %v85
    %338 = vmatprep.subr.mxu0 %v84
    %339 = vmatpush1.msra.mxu0 %v83
    %340 = vmatprep.subr.mxu0 %v146
    %341 = vmatpush2.msra.mxu0 %v145
    %342 = vmatprep.subr.mxu0 %v144
    %343 = vmatpush2.msra.mxu0 %v143
    %344 = vmatprep.subr.mxu0 %v142
    %345 = vmatpush2.msra.mxu0 %v141
    %346 = vmatprep.subr.mxu0 %v140
    %347 = vmatpush2.msra.mxu0 %v139
    %348 = vmatprep.subr.mxu0 %v138
    %349 = vmatpush2.msra.mxu0 %v137
    %350 = vmatprep.subr.mxu0 %v136
    %351 = vmatpush2.msra.mxu0 %v135
    %352 = vmatprep.subr.mxu0 %v134
    %353 = vmatpush2.msra.mxu0 %v133
    %354 = vmatprep.subr.mxu0 %v132
    %355 = vmatpush2.msra.mxu0 %v131
    %356 = vmatprep.subr.mxu0 %v130
    %357 = vmatpush2.msra.mxu0 %v129
    %358 = vmatprep.subr.mxu0 %v128
    %359 = vmatpush2.msra.mxu0 %v127
    %360 = vmatprep.subr.mxu0 %v126
    %361 = vmatpush2.msra.mxu0 %v125
    %362 = vmatprep.subr.mxu0 %v124
    %363 = vmatpush2.msra.mxu0 %v123
    %364 = vmatprep.subr.mxu0 %v122
    %365 = vmatpush2.msra.mxu0 %v121
    %366 = vmatprep.subr.mxu0 %v120
    %367 = vmatpush2.msra.mxu0 %v119
    %368 = vmatprep.subr.mxu0 %v118
    %369 = vmatpush2.msra.mxu0 %v117
    %370 = vmatprep.subr.mxu0 %v116
    %371 = vmatpush2.msra.mxu0 %v115
    %372 = vmatprep.mubr.f32.mxu0 %v78
    %373 = vmatmul.mubr.f32.gmra.mxu0 %v77
    %v374 = vpop.f32.mrf.mxu0
    %v375 = vadd.f32 0.0, %v374
    %v376 = vpop.f32.mrf.mxu0
    %v377 = vadd.f32 0.0, %v376
    %378 = vmatprep.mubr.f32.mxu0 %v80
    %379 = vmatmul.mubr.f32.gmra.mxu0 %v79
    %v380 = vpop.f32.mrf.mxu0
    %v381 = vadd.f32 0.0, %v380
    %v382 = vpop.f32.mrf.mxu0
    %v383 = vadd.f32 0.0, %v382
    %384 = vdwg.mxu0
    %385 = vmatprep.subr.mxu0 0.0
    %386 = vmatpush1.msra.mxu0 0.0
    %387 = vmatprep.subr.mxu0 0.0
    %388 = vmatpush1.msra.mxu0 0.0
    %389 = vmatprep.subr.mxu0 0.0
    %390 = vmatpush1.msra.mxu0 0.0
    %391 = vmatprep.subr.mxu0 0.0
    %392 = vmatpush1.msra.mxu0 0.0
    %393 = vmatprep.subr.mxu0 0.0
    %394 = vmatpush1.msra.mxu0 0.0
    %395 = vmatprep.subr.mxu0 0.0
    %396 = vmatpush1.msra.mxu0 0.0
    %397 = vmatprep.subr.mxu0 0.0
    %398 = vmatpush1.msra.mxu0 0.0
    %399 = vmatprep.subr.mxu0 0.0
    %400 = vmatpush1.msra.mxu0 0.0
    %401 = vmatprep.subr.mxu0 0.0
    %402 = vmatpush1.msra.mxu0 0.0
    %403 = vmatprep.subr.mxu0 0.0
    %404 = vmatpush1.msra.mxu0 0.0
    %405 = vmatprep.subr.mxu0 0.0
    %406 = vmatpush1.msra.mxu0 0.0
    %407 = vmatprep.subr.mxu0 0.0
    %408 = vmatpush1.msra.mxu0 0.0
    %409 = vmatprep.subr.mxu0 0.0
    %410 = vmatpush1.msra.mxu0 0.0
    %411 = vmatprep.subr.mxu0 0.0
    %412 = vmatpush1.msra.mxu0 0.0
    %413 = vmatprep.subr.mxu0 %v383
    %414 = vmatpush1.msra.mxu0 %v381
    %415 = vmatprep.subr.mxu0 %v377
    %416 = vmatpush1.msra.mxu0 %v375
    %417 = vmatprep.subr.mxu0 0.0
    %418 = vmatpush2.msra.mxu0 0.0
    %419 = vmatprep.subr.mxu0 0.0
    %420 = vmatpush2.msra.mxu0 0.0
    %421 = vmatprep.subr.mxu0 0.0
    %422 = vmatpush2.msra.mxu0 0.0
    %423 = vmatprep.subr.mxu0 0.0
    %424 = vmatpush2.msra.mxu0 0.0
    %425 = vmatprep.subr.mxu0 0.0
    %426 = vmatpush2.msra.mxu0 0.0
    %427 = vmatprep.subr.mxu0 0.0
    %428 = vmatpush2.msra.mxu0 0.0
    %429 = vmatprep.subr.mxu0 0.0
    %430 = vmatpush2.msra.mxu0 0.0
    %431 = vmatprep.subr.mxu0 0.0
    %432 = vmatpush2.msra.mxu0 0.0
    %433 = vmatprep.subr.mxu0 0.0
    %434 = vmatpush2.msra.mxu0 0.0
    %435 = vmatprep.subr.mxu0 0.0
    %436 = vmatpush2.msra.mxu0 0.0
    %437 = vmatprep.subr.mxu0 0.0
    %438 = vmatpush2.msra.mxu0 0.0
    %439 = vmatprep.subr.mxu0 0.0
    %440 = vmatpush2.msra.mxu0 0.0
    %441 = vmatprep.subr.mxu0 0.0
    %442 = vmatpush2.msra.mxu0 0.0
    %443 = vmatprep.subr.mxu0 0.0
    %444 = vmatpush2.msra.mxu0 0.0
    %445 = vmatprep.subr.mxu0 0.0
    %446 = vmatpush2.msra.mxu0 0.0
    %447 = vmatprep.subr.mxu0 0.0
    %448 = vmatpush2.msra.mxu0 0.0
    %449 = vmatprep.mubr.f32.mxu0 0.0
    %450 = vmatmul.mubr.f32.gmra.mxu0 %v226
    %v451 = vpop.f32.mrf.mxu0
    %v452 = vadd.f32 0.0, %v451
    %v453 = vpop.f32.mrf.mxu0
    %v454 = vadd.f32 0.0, %v453
    %455 = vmatprep.mubr.f32.mxu0 0.0
    %456 = vmatmul.mubr.f32.gmra.mxu0 %v229
    %v457 = vpop.f32.mrf.mxu0
    %v458 = vadd.f32 0.0, %v457
    %v459 = vpop.f32.mrf.mxu0
    %v460 = vadd.f32 0.0, %v459
    %461 = vdwg.mxu0
    %v462 = vmul.f32 %v73, %v73
    %v463 = vmul.f32 %v74, %v74
    %v464 = vmul.f32 %v75, %v75
    %v465 = vmul.f32 %v76, %v76
    %466 = vmatprep.subr.mxu0 %v114
    %467 = vmatpush1.msra.mxu0 %v113
    %468 = vmatprep.subr.mxu0 %v112
    %469 = vmatpush1.msra.mxu0 %v111
    %470 = vmatprep.subr.mxu0 %v110
    %471 = vmatpush1.msra.mxu0 %v109
    %472 = vmatprep.subr.mxu0 %v108
    %473 = vmatpush1.msra.mxu0 %v107
    %474 = vmatprep.subr.mxu0 %v106
    %475 = vmatpush1.msra.mxu0 %v105
    %476 = vmatprep.subr.mxu0 %v104
    %477 = vmatpush1.msra.mxu0 %v103
    %478 = vmatprep.subr.mxu0 %v102
    %479 = vmatpush1.msra.mxu0 %v101
    %480 = vmatprep.subr.mxu0 %v100
    %481 = vmatpush1.msra.mxu0 %v99
    %482 = vmatprep.subr.mxu0 %v98
    %483 = vmatpush1.msra.mxu0 %v97
    %484 = vmatprep.subr.mxu0 %v96
    %485 = vmatpush1.msra.mxu0 %v95
    %486 = vmatprep.subr.mxu0 %v94
    %487 = vmatpush1.msra.mxu0 %v93
    %488 = vmatprep.subr.mxu0 %v92
    %489 = vmatpush1.msra.mxu0 %v91
    %490 = vmatprep.subr.mxu0 %v90
    %491 = vmatpush1.msra.mxu0 %v89
    %492 = vmatprep.subr.mxu0 %v88
    %493 = vmatpush1.msra.mxu0 %v87
    %494 = vmatprep.subr.mxu0 %v86
    %495 = vmatpush1.msra.mxu0 %v85
    %496 = vmatprep.subr.mxu0 %v84
    %497 = vmatpush1.msra.mxu0 %v83
    %498 = vmatprep.subr.mxu0 %v146
    %499 = vmatpush2.msra.mxu0 %v145
    %500 = vmatprep.subr.mxu0 %v144
    %501 = vmatpush2.msra.mxu0 %v143
    %502 = vmatprep.subr.mxu0 %v142
    %503 = vmatpush2.msra.mxu0 %v141
    %504 = vmatprep.subr.mxu0 %v140
    %505 = vmatpush2.msra.mxu0 %v139
    %506 = vmatprep.subr.mxu0 %v138
    %507 = vmatpush2.msra.mxu0 %v137
    %508 = vmatprep.subr.mxu0 %v136
    %509 = vmatpush2.msra.mxu0 %v135
    %510 = vmatprep.subr.mxu0 %v134
    %511 = vmatpush2.msra.mxu0 %v133
    %512 = vmatprep.subr.mxu0 %v132
    %513 = vmatpush2.msra.mxu0 %v131
    %514 = vmatprep.subr.mxu0 %v130
    %515 = vmatpush2.msra.mxu0 %v129
    %516 = vmatprep.subr.mxu0 %v128
    %517 = vmatpush2.msra.mxu0 %v127
    %518 = vmatprep.subr.mxu0 %v126
    %519 = vmatpush2.msra.mxu0 %v125
    %520 = vmatprep.subr.mxu0 %v124
    %521 = vmatpush2.msra.mxu0 %v123
    %522 = vmatprep.subr.mxu0 %v122
    %523 = vmatpush2.msra.mxu0 %v121
    %524 = vmatprep.subr.mxu0 %v120
    %525 = vmatpush2.msra.mxu0 %v119
    %526 = vmatprep.subr.mxu0 %v118
    %527 = vmatpush2.msra.mxu0 %v117
    %528 = vmatprep.subr.mxu0 %v116
    %529 = vmatpush2.msra.mxu0 %v115
    %530 = vmatprep.mubr.f32.mxu0 %v463
    %531 = vmatmul.mubr.f32.gmra.mxu0 %v462
    %v532 = vpop.f32.mrf.mxu0
    %v533 = vadd.f32 0.0, %v532
    %v534 = vpop.f32.mrf.mxu0
    %v535 = vadd.f32 0.0, %v534
    %536 = vmatprep.mubr.f32.mxu0 %v465
    %537 = vmatmul.mubr.f32.gmra.mxu0 %v464
    %v538 = vpop.f32.mrf.mxu0
    %v539 = vadd.f32 0.0, %v538
    %v540 = vpop.f32.mrf.mxu0
    %v541 = vadd.f32 0.0, %v540
    %542 = vdwg.mxu0
    %543 = vmatprep.subr.mxu0 0.0
    %544 = vmatpush1.msra.mxu0 0.0
    %545 = vmatprep.subr.mxu0 0.0
    %546 = vmatpush1.msra.mxu0 0.0
    %547 = vmatprep.subr.mxu0 0.0
    %548 = vmatpush1.msra.mxu0 0.0
    %549 = vmatprep.subr.mxu0 0.0
    %550 = vmatpush1.msra.mxu0 0.0
    %551 = vmatprep.subr.mxu0 0.0
    %552 = vmatpush1.msra.mxu0 0.0
    %553 = vmatprep.subr.mxu0 0.0
    %554 = vmatpush1.msra.mxu0 0.0
    %555 = vmatprep.subr.mxu0 0.0
    %556 = vmatpush1.msra.mxu0 0.0
    %557 = vmatprep.subr.mxu0 0.0
    %558 = vmatpush1.msra.mxu0 0.0
    %559 = vmatprep.subr.mxu0 0.0
    %560 = vmatpush1.msra.mxu0 0.0
    %561 = vmatprep.subr.mxu0 0.0
    %562 = vmatpush1.msra.mxu0 0.0
    %563 = vmatprep.subr.mxu0 0.0
    %564 = vmatpush1.msra.mxu0 0.0
    %565 = vmatprep.subr.mxu0 0.0
    %566 = vmatpush1.msra.mxu0 0.0
    %567 = vmatprep.subr.mxu0 0.0
    %568 = vmatpush1.msra.mxu0 0.0
    %569 = vmatprep.subr.mxu0 0.0
    %570 = vmatpush1.msra.mxu0 0.0
    %571 = vmatprep.subr.mxu0 %v541
    %572 = vmatpush1.msra.mxu0 %v539
    %573 = vmatprep.subr.mxu0 %v535
    %574 = vmatpush1.msra.mxu0 %v533
    %575 = vmatprep.subr.mxu0 0.0
    %576 = vmatpush2.msra.mxu0 0.0
    %577 = vmatprep.subr.mxu0 0.0
    %578 = vmatpush2.msra.mxu0 0.0
    %579 = vmatprep.subr.mxu0 0.0
    %580 = vmatpush2.msra.mxu0 0.0
    %581 = vmatprep.subr.mxu0 0.0
    %582 = vmatpush2.msra.mxu0 0.0
    %583 = vmatprep.subr.mxu0 0.0
    %584 = vmatpush2.msra.mxu0 0.0
    %585 = vmatprep.subr.mxu0 0.0
    %586 = vmatpush2.msra.mxu0 0.0
    %587 = vmatprep.subr.mxu0 0.0
    %588 = vmatpush2.msra.mxu0 0.0
    %589 = vmatprep.subr.mxu0 0.0
    %590 = vmatpush2.msra.mxu0 0.0
    %591 = vmatprep.subr.mxu0 0.0
    %592 = vmatpush2.msra.mxu0 0.0
    %593 = vmatprep.subr.mxu0 0.0
    %594 = vmatpush2.msra.mxu0 0.0
    %595 = vmatprep.subr.mxu0 0.0
    %596 = vmatpush2.msra.mxu0 0.0
    %597 = vmatprep.subr.mxu0 0.0
    %598 = vmatpush2.msra.mxu0 0.0
    %599 = vmatprep.subr.mxu0 0.0
    %600 = vmatpush2.msra.mxu0 0.0
    %601 = vmatprep.subr.mxu0 0.0
    %602 = vmatpush2.msra.mxu0 0.0
    %603 = vmatprep.subr.mxu0 0.0
    %604 = vmatpush2.msra.mxu0 0.0
    %605 = vmatprep.subr.mxu0 0.0
    %606 = vmatpush2.msra.mxu0 0.0
    %607 = vmatprep.mubr.f32.mxu0 0.0
    %608 = vmatmul.mubr.f32.gmra.mxu0 %v226
    %v609 = vpop.f32.mrf.mxu0
    %v610 = vadd.f32 0.0, %v609
    %v611 = vpop.f32.mrf.mxu0
    %v612 = vadd.f32 0.0, %v611
    %613 = vmatprep.mubr.f32.mxu0 0.0
    %614 = vmatmul.mubr.f32.gmra.mxu0 %v229
    %v615 = vpop.f32.mrf.mxu0
    %v616 = vadd.f32 0.0, %v615
    %v617 = vpop.f32.mrf.mxu0
    %v618 = vadd.f32 0.0, %v617
    %619 = vdwg.mxu0
    %v620 = vmul.f32 %v77, %v77
    %v621 = vmul.f32 %v78, %v78
    %v622 = vmul.f32 %v79, %v79
    %v623 = vmul.f32 %v80, %v80
    %624 = vmatprep.subr.mxu0 %v114
    %625 = vmatpush1.msra.mxu0 %v113
    %626 = vmatprep.subr.mxu0 %v112
    %627 = vmatpush1.msra.mxu0 %v111
    %628 = vmatprep.subr.mxu0 %v110
    %629 = vmatpush1.msra.mxu0 %v109
    %630 = vmatprep.subr.mxu0 %v108
    %631 = vmatpush1.msra.mxu0 %v107
    %632 = vmatprep.subr.mxu0 %v106
    %633 = vmatpush1.msra.mxu0 %v105
    %634 = vmatprep.subr.mxu0 %v104
    %635 = vmatpush1.msra.mxu0 %v103
    %636 = vmatprep.subr.mxu0 %v102
    %637 = vmatpush1.msra.mxu0 %v101
    %638 = vmatprep.subr.mxu0 %v100
    %639 = vmatpush1.msra.mxu0 %v99
    %640 = vmatprep.subr.mxu0 %v98
    %641 = vmatpush1.msra.mxu0 %v97
    %642 = vmatprep.subr.mxu0 %v96
    %643 = vmatpush1.msra.mxu0 %v95
    %644 = vmatprep.subr.mxu0 %v94
    %645 = vmatpush1.msra.mxu0 %v93
    %646 = vmatprep.subr.mxu0 %v92
    %647 = vmatpush1.msra.mxu0 %v91
    %648 = vmatprep.subr.mxu0 %v90
    %649 = vmatpush1.msra.mxu0 %v89
    %650 = vmatprep.subr.mxu0 %v88
    %651 = vmatpush1.msra.mxu0 %v87
    %652 = vmatprep.subr.mxu0 %v86
    %653 = vmatpush1.msra.mxu0 %v85
    %654 = vmatprep.subr.mxu0 %v84
    %655 = vmatpush1.msra.mxu0 %v83
    %656 = vmatprep.subr.mxu0 %v146
    %657 = vmatpush2.msra.mxu0 %v145
    %658 = vmatprep.subr.mxu0 %v144
    %659 = vmatpush2.msra.mxu0 %v143
    %660 = vmatprep.subr.mxu0 %v142
    %661 = vmatpush2.msra.mxu0 %v141
    %662 = vmatprep.subr.mxu0 %v140
    %663 = vmatpush2.msra.mxu0 %v139
    %664 = vmatprep.subr.mxu0 %v138
    %665 = vmatpush2.msra.mxu0 %v137
    %666 = vmatprep.subr.mxu0 %v136
    %667 = vmatpush2.msra.mxu0 %v135
    %668 = vmatprep.subr.mxu0 %v134
    %669 = vmatpush2.msra.mxu0 %v133
    %670 = vmatprep.subr.mxu0 %v132
    %671 = vmatpush2.msra.mxu0 %v131
    %672 = vmatprep.subr.mxu0 %v130
    %673 = vmatpush2.msra.mxu0 %v129
    %674 = vmatprep.subr.mxu0 %v128
    %675 = vmatpush2.msra.mxu0 %v127
    %676 = vmatprep.subr.mxu0 %v126
    %677 = vmatpush2.msra.mxu0 %v125
    %678 = vmatprep.subr.mxu0 %v124
    %679 = vmatpush2.msra.mxu0 %v123
    %680 = vmatprep.subr.mxu0 %v122
    %681 = vmatpush2.msra.mxu0 %v121
    %682 = vmatprep.subr.mxu0 %v120
    %683 = vmatpush2.msra.mxu0 %v119
    %684 = vmatprep.subr.mxu0 %v118
    %685 = vmatpush2.msra.mxu0 %v117
    %686 = vmatprep.subr.mxu0 %v116
    %687 = vmatpush2.msra.mxu0 %v115
    %688 = vmatprep.mubr.f32.mxu0 %v621
    %689 = vmatmul.mubr.f32.gmra.mxu0 %v620
    %v690 = vpop.f32.mrf.mxu0
    %v691 = vadd.f32 0.0, %v690
    %v692 = vpop.f32.mrf.mxu0
    %v693 = vadd.f32 0.0, %v692
    %694 = vmatprep.mubr.f32.mxu0 %v623
    %695 = vmatmul.mubr.f32.gmra.mxu0 %v622
    %v696 = vpop.f32.mrf.mxu0
    %v697 = vadd.f32 0.0, %v696
    %v698 = vpop.f32.mrf.mxu0
    %v699 = vadd.f32 0.0, %v698
    %700 = vdwg.mxu0
    %701 = vmatprep.subr.mxu0 0.0
    %702 = vmatpush1.msra.mxu0 0.0
    %703 = vmatprep.subr.mxu0 0.0
    %704 = vmatpush1.msra.mxu0 0.0
    %705 = vmatprep.subr.mxu0 0.0
    %706 = vmatpush1.msra.mxu0 0.0
    %707 = vmatprep.subr.mxu0 0.0
    %708 = vmatpush1.msra.mxu0 0.0
    %709 = vmatprep.subr.mxu0 0.0
    %710 = vmatpush1.msra.mxu0 0.0
    %711 = vmatprep.subr.mxu0 0.0
    %712 = vmatpush1.msra.mxu0 0.0
    %713 = vmatprep.subr.mxu0 0.0
    %714 = vmatpush1.msra.mxu0 0.0
    %715 = vmatprep.subr.mxu0 0.0
    %716 = vmatpush1.msra.mxu0 0.0
    %717 = vmatprep.subr.mxu0 0.0
    %718 = vmatpush1.msra.mxu0 0.0
    %719 = vmatprep.subr.mxu0 0.0
    %720 = vmatpush1.msra.mxu0 0.0
    %721 = vmatprep.subr.mxu0 0.0
    %722 = vmatpush1.msra.mxu0 0.0
    %723 = vmatprep.subr.mxu0 0.0
    %724 = vmatpush1.msra.mxu0 0.0
    %725 = vmatprep.subr.mxu0 0.0
    %726 = vmatpush1.msra.mxu0 0.0
    %727 = vmatprep.subr.mxu0 0.0
    %728 = vmatpush1.msra.mxu0 0.0
    %729 = vmatprep.subr.mxu0 %v699
    %730 = vmatpush1.msra.mxu0 %v697
    %731 = vmatprep.subr.mxu0 %v693
    %732 = vmatpush1.msra.mxu0 %v691
    %733 = vmatprep.subr.mxu0 0.0
    %734 = vmatpush2.msra.mxu0 0.0
    %735 = vmatprep.subr.mxu0 0.0
    %736 = vmatpush2.msra.mxu0 0.0
    %737 = vmatprep.subr.mxu0 0.0
    %738 = vmatpush2.msra.mxu0 0.0
    %739 = vmatprep.subr.mxu0 0.0
    %740 = vmatpush2.msra.mxu0 0.0
    %741 = vmatprep.subr.mxu0 0.0
    %742 = vmatpush2.msra.mxu0 0.0
    %743 = vmatprep.subr.mxu0 0.0
    %744 = vmatpush2.msra.mxu0 0.0
    %745 = vmatprep.subr.mxu0 0.0
    %746 = vmatpush2.msra.mxu0 0.0
    %747 = vmatprep.subr.mxu0 0.0
    %748 = vmatpush2.msra.mxu0 0.0
    %749 = vmatprep.subr.mxu0 0.0
    %750 = vmatpush2.msra.mxu0 0.0
    %751 = vmatprep.subr.mxu0 0.0
    %752 = vmatpush2.msra.mxu0 0.0
    %753 = vmatprep.subr.mxu0 0.0
    %754 = vmatpush2.msra.mxu0 0.0
    %755 = vmatprep.subr.mxu0 0.0
    %756 = vmatpush2.msra.mxu0 0.0
    %757 = vmatprep.subr.mxu0 0.0
    %758 = vmatpush2.msra.mxu0 0.0
    %759 = vmatprep.subr.mxu0 0.0
    %760 = vmatpush2.msra.mxu0 0.0
    %761 = vmatprep.subr.mxu0 0.0
    %762 = vmatpush2.msra.mxu0 0.0
    %763 = vmatprep.subr.mxu0 0.0
    %764 = vmatpush2.msra.mxu0 0.0
    %765 = vmatprep.mubr.f32.mxu0 0.0
    %766 = vmatmul.mubr.f32.gmra.mxu0 %v226
    %v767 = vpop.f32.mrf.mxu0
    %v768 = vadd.f32 0.0, %v767
    %v769 = vpop.f32.mrf.mxu0
    %v770 = vadd.f32 0.0, %v769
    %771 = vmatprep.mubr.f32.mxu0 0.0
    %772 = vmatmul.mubr.f32.gmra.mxu0 %v229
    %v773 = vpop.f32.mrf.mxu0
    %v774 = vadd.f32 0.0, %v773
    %v775 = vpop.f32.mrf.mxu0
    %v776 = vadd.f32 0.0, %v775
    %777 = vdwg.mxu0
    %v778 = vmul.f32 %v73, %v77
    %v779 = vmul.f32 %v74, %v78
    %v780 = vmul.f32 %v75, %v79
    %v781 = vmul.f32 %v76, %v80
    %782 = vmatprep.subr.mxu0 %v114
    %783 = vmatpush1.msra.mxu0 %v113
    %784 = vmatprep.subr.mxu0 %v112
    %785 = vmatpush1.msra.mxu0 %v111
    %786 = vmatprep.subr.mxu0 %v110
    %787 = vmatpush1.msra.mxu0 %v109
    %788 = vmatprep.subr.mxu0 %v108
    %789 = vmatpush1.msra.mxu0 %v107
    %790 = vmatprep.subr.mxu0 %v106
    %791 = vmatpush1.msra.mxu0 %v105
    %792 = vmatprep.subr.mxu0 %v104
    %793 = vmatpush1.msra.mxu0 %v103
    %794 = vmatprep.subr.mxu0 %v102
    %795 = vmatpush1.msra.mxu0 %v101
    %796 = vmatprep.subr.mxu0 %v100
    %797 = vmatpush1.msra.mxu0 %v99
    %798 = vmatprep.subr.mxu0 %v98
    %799 = vmatpush1.msra.mxu0 %v97
    %800 = vmatprep.subr.mxu0 %v96
    %801 = vmatpush1.msra.mxu0 %v95
    %802 = vmatprep.subr.mxu0 %v94
    %803 = vmatpush1.msra.mxu0 %v93
    %804 = vmatprep.subr.mxu0 %v92
    %805 = vmatpush1.msra.mxu0 %v91
    %806 = vmatprep.subr.mxu0 %v90
    %807 = vmatpush1.msra.mxu0 %v89
    %808 = vmatprep.subr.mxu0 %v88
    %809 = vmatpush1.msra.mxu0 %v87
    %810 = vmatprep.subr.mxu0 %v86
    %811 = vmatpush1.msra.mxu0 %v85
    %812 = vmatprep.subr.mxu0 %v84
    %813 = vmatpush1.msra.mxu0 %v83
    %814 = vmatprep.subr.mxu0 %v146
    %815 = vmatpush2.msra.mxu0 %v145
    %816 = vmatprep.subr.mxu0 %v144
    %817 = vmatpush2.msra.mxu0 %v143
    %818 = vmatprep.subr.mxu0 %v142
    %819 = vmatpush2.msra.mxu0 %v141
    %820 = vmatprep.subr.mxu0 %v140
    %821 = vmatpush2.msra.mxu0 %v139
    %822 = vmatprep.subr.mxu0 %v138
    %823 = vmatpush2.msra.mxu0 %v137
    %824 = vmatprep.subr.mxu0 %v136
    %825 = vmatpush2.msra.mxu0 %v135
    %826 = vmatprep.subr.mxu0 %v134
    %827 = vmatpush2.msra.mxu0 %v133
    %828 = vmatprep.subr.mxu0 %v132
    %829 = vmatpush2.msra.mxu0 %v131
    %830 = vmatprep.subr.mxu0 %v130
    %831 = vmatpush2.msra.mxu0 %v129
    %832 = vmatprep.subr.mxu0 %v128
    %833 = vmatpush2.msra.mxu0 %v127
    %834 = vmatprep.subr.mxu0 %v126
    %835 = vmatpush2.msra.mxu0 %v125
    %836 = vmatprep.subr.mxu0 %v124
    %837 = vmatpush2.msra.mxu0 %v123
    %838 = vmatprep.subr.mxu0 %v122
    %839 = vmatpush2.msra.mxu0 %v121
    %840 = vmatprep.subr.mxu0 %v120
    %841 = vmatpush2.msra.mxu0 %v119
    %842 = vmatprep.subr.mxu0 %v118
    %843 = vmatpush2.msra.mxu0 %v117
    %844 = vmatprep.subr.mxu0 %v116
    %845 = vmatpush2.msra.mxu0 %v115
    %846 = vmatprep.mubr.f32.mxu0 %v779
    %847 = vmatmul.mubr.f32.gmra.mxu0 %v778
    %v848 = vpop.f32.mrf.mxu0
    %v849 = vadd.f32 0.0, %v848
    %v850 = vpop.f32.mrf.mxu0
    %v851 = vadd.f32 0.0, %v850
    %852 = vmatprep.mubr.f32.mxu0 %v781
    %853 = vmatmul.mubr.f32.gmra.mxu0 %v780
    %v854 = vpop.f32.mrf.mxu0
    %v855 = vadd.f32 0.0, %v854
    %v856 = vpop.f32.mrf.mxu0
    %v857 = vadd.f32 0.0, %v856
    %858 = vdwg.mxu0
    %859 = vmatprep.subr.mxu0 0.0
    %860 = vmatpush1.msra.mxu0 0.0
    %861 = vmatprep.subr.mxu0 0.0
    %862 = vmatpush1.msra.mxu0 0.0
    %863 = vmatprep.subr.mxu0 0.0
    %864 = vmatpush1.msra.mxu0 0.0
    %865 = vmatprep.subr.mxu0 0.0
    %866 = vmatpush1.msra.mxu0 0.0
    %867 = vmatprep.subr.mxu0 0.0
    %868 = vmatpush1.msra.mxu0 0.0
    %869 = vmatprep.subr.mxu0 0.0
    %870 = vmatpush1.msra.mxu0 0.0
    %871 = vmatprep.subr.mxu0 0.0
    %872 = vmatpush1.msra.mxu0 0.0
    %873 = vmatprep.subr.mxu0 0.0
    %874 = vmatpush1.msra.mxu0 0.0
    %875 = vmatprep.subr.mxu0 0.0
    %876 = vmatpush1.msra.mxu0 0.0
    %877 = vmatprep.subr.mxu0 0.0
    %878 = vmatpush1.msra.mxu0 0.0
    %879 = vmatprep.subr.mxu0 0.0
    %880 = vmatpush1.msra.mxu0 0.0
    %881 = vmatprep.subr.mxu0 0.0
    %882 = vmatpush1.msra.mxu0 0.0
    %883 = vmatprep.subr.mxu0 0.0
    %884 = vmatpush1.msra.mxu0 0.0
    %885 = vmatprep.subr.mxu0 0.0
    %886 = vmatpush1.msra.mxu0 0.0
    %887 = vmatprep.subr.mxu0 %v857
    %888 = vmatpush1.msra.mxu0 %v855
    %889 = vmatprep.subr.mxu0 %v851
    %890 = vmatpush1.msra.mxu0 %v849
    %891 = vmatprep.subr.mxu0 0.0
    %892 = vmatpush2.msra.mxu0 0.0
    %893 = vmatprep.subr.mxu0 0.0
    %894 = vmatpush2.msra.mxu0 0.0
    %895 = vmatprep.subr.mxu0 0.0
    %896 = vmatpush2.msra.mxu0 0.0
    %897 = vmatprep.subr.mxu0 0.0
    %898 = vmatpush2.msra.mxu0 0.0
    %899 = vmatprep.subr.mxu0 0.0
    %900 = vmatpush2.msra.mxu0 0.0
    %901 = vmatprep.subr.mxu0 0.0
    %902 = vmatpush2.msra.mxu0 0.0
    %903 = vmatprep.subr.mxu0 0.0
    %904 = vmatpush2.msra.mxu0 0.0
    %905 = vmatprep.subr.mxu0 0.0
    %906 = vmatpush2.msra.mxu0 0.0
    %907 = vmatprep.subr.mxu0 0.0
    %908 = vmatpush2.msra.mxu0 0.0
    %909 = vmatprep.subr.mxu0 0.0
    %910 = vmatpush2.msra.mxu0 0.0
    %911 = vmatprep.subr.mxu0 0.0
    %912 = vmatpush2.msra.mxu0 0.0
    %913 = vmatprep.subr.mxu0 0.0
    %914 = vmatpush2.msra.mxu0 0.0
    %915 = vmatprep.subr.mxu0 0.0
    %916 = vmatpush2.msra.mxu0 0.0
    %917 = vmatprep.subr.mxu0 0.0
    %918 = vmatpush2.msra.mxu0 0.0
    %919 = vmatprep.subr.mxu0 0.0
    %920 = vmatpush2.msra.mxu0 0.0
    %921 = vmatprep.subr.mxu0 0.0
    %922 = vmatpush2.msra.mxu0 0.0
    %923 = vmatprep.mubr.f32.mxu0 0.0
    %924 = vmatmul.mubr.f32.gmra.mxu0 %v226
    %v925 = vpop.f32.mrf.mxu0
    %v926 = vadd.f32 0.0, %v925
    %v927 = vpop.f32.mrf.mxu0
    %v928 = vadd.f32 0.0, %v927
    %929 = vmatprep.mubr.f32.mxu0 0.0
    %930 = vmatmul.mubr.f32.gmra.mxu0 %v229
    %v931 = vpop.f32.mrf.mxu0
    %v932 = vadd.f32 0.0, %v931
    %v933 = vpop.f32.mrf.mxu0
    %v934 = vadd.f32 0.0, %v933
    %935 = vdwg.mxu0
    %v936 = vmul.f32 %v298, %v298
    %v937 = vmul.f32 %v300, %v300
    %v938 = vmul.f32 %v304, %v304
    %v939 = vmul.f32 %v306, %v306
    %v940 = vmul.f32 %v452, %v452
    %v941 = vmul.f32 %v454, %v454
    %v942 = vmul.f32 %v458, %v458
    %v943 = vmul.f32 %v460, %v460
    %v944 = vmul.f32 %v298, %v452
    %v945 = vmul.f32 %v300, %v454
    %v946 = vmul.f32 %v304, %v458
    %v947 = vmul.f32 %v306, %v460
    %v948 = vsub.f32 %v610, %v936
    %v949 = vsub.f32 %v612, %v937
    %v950 = vsub.f32 %v616, %v938
    %v951 = vsub.f32 %v618, %v939
    %v952 = vsub.f32 %v768, %v940
    %v953 = vsub.f32 %v770, %v941
    %v954 = vsub.f32 %v774, %v942
    %v955 = vsub.f32 %v776, %v943
    %v956 = vsub.f32 %v926, %v944
    %v957 = vsub.f32 %v928, %v945
    %v958 = vsub.f32 %v932, %v946
    %v959 = vsub.f32 %v934, %v947
    %v960 = vmul.f32 %v944, 2.0
    %v961 = vmul.f32 %v945, 2.0
    %v962 = vmul.f32 %v946, 2.0
    %v963 = vmul.f32 %v947, 2.0
    %v964 = vadd.f32 %v960, 0.0001
    %v965 = vadd.f32 %v961, 0.0001
    %v966 = vadd.f32 %v962, 0.0001
    %v967 = vadd.f32 %v963, 0.0001
    %v968 = vmul.f32 %v956, 2.0
    %v969 = vmul.f32 %v957, 2.0
    %v970 = vmul.f32 %v958, 2.0
    %v971 = vmul.f32 %v959, 2.0
    %v972 = vadd.f32 %v968, 0.0009
    %v973 = vadd.f32 %v969, 0.0009
    %v974 = vadd.f32 %v970, 0.0009
    %v975 = vadd.f32 %v971, 0.0009
    %v976 = vmul.f32 %v964, %v972
    %v977 = vmul.f32 %v965, %v973
    %v978 = vmul.f32 %v966, %v974
    %v979 = vmul.f32 %v967, %v975
    %v980 = vadd.f32 %v936, %v940
    %v981 = vadd.f32 %v937, %v941
    %v982 = vadd.f32 %v938, %v942
    %v983 = vadd.f32 %v939, %v943
    %v984 = vadd.f32 %v980, 0.0001
    %v985 = vadd.f32 %v981, 0.0001
    %v986 = vadd.f32 %v982, 0.0001
    %v987 = vadd.f32 %v983, 0.0001
    %v988 = vadd.f32 %v948, %v952
    %v989 = vadd.f32 %v949, %v953
    %v990 = vadd.f32 %v950, %v954
    %v991 = vadd.f32 %v951, %v955
    %v992 = vadd.f32 %v988, 0.0009
    %v993 = vadd.f32 %v989, 0.0009
    %v994 = vadd.f32 %v990, 0.0009
    %v995 = vadd.f32 %v991, 0.0009
    %v996 = vmul.f32 %v984, %v992
    %v997 = vmul.f32 %v985, %v993
    %v998 = vmul.f32 %v986, %v994
    %v999 = vmul.f32 %v987, %v995
    %v1000 = vrcp.pop %v996
    %v1001 = vmul.f32 %v976, %v1000
    %v1002 = vrcp.pop %v997
    %v1003 = vmul.f32 %v977, %v1002
    %v1004 = vrcp.pop %v998
    %v1005 = vmul.f32 %v978, %v1004
    %v1006 = vrcp.pop %v999
    %v1007 = vmul.f32 %v979, %v1006
    %v1008 = vadd.f32 %v1001, %v1005
    %v1009 = vrot.slane %v1008, 4
    %v1010 = vadd.f32 %v1008, %v1009
    %v1011 = vrot.slane %v1010, 2
    %v1012 = vadd.f32 %v1010, %v1011
    %v1013 = vrot.slane %v1012, 1
    %v1014 = vadd.f32 %v1012, %v1013
    %v1015 = vadd.f32 %v1003, %v1007
    %v1016 = vrot.slane %v1015, 4
    %v1017 = vadd.f32 %v1015, %v1016
    %v1018 = vrot.slane %v1017, 2
    %v1019 = vadd.f32 %v1017, %v1018
    %v1020 = vrot.slane %v1019, 1
    %v1021 = vadd.f32 %v1019, %v1020
    %v1024 = vcombine.low %v1014, %v1021
    %v1026 = vunpack.c.l.s4 1966171168
    %v1027 = vunpack.c.0.s8 %v1026
    %v1028 = vlaneseq
    %v1029 = vshrl.u32 %v1028, 7
    %v1030 = vsub.s32 %v1027, %v1029
    %v1031 = vrot.slane %v1024, %v1030
    %v1033 = vunpack.c.l.s4 1966171168
    %v1034 = vunpack.c.0.s8 %v1033
    %v1035 = vlaneseq
    %v1036 = vshrl.u32 %v1035, 7
    %v1037 = vsub.s32 %v1034, %v1036
    %v1038 = vrot.slane %v1031, %v1037
    %v1040 = vlaneseq
    %vm1041 = vcmp.ge.s32.totalorder %v1040, 0
    %vm1042 = vcmp.lt.s32.totalorder %v1040, 256
    %vm1043 = vmand %vm1041, %vm1042
    %1044 = vst.msk [vmem:[#allocation10] sm:$0x3] %vm1043, %v1038
    // Predicated region
    $region34: #{tpu_custom_call.1} parent=1 // pred_check
      _
    $region35: #{tpu_custom_call.1} parent=1 // pred_check_branch
      %1046 = sbr.rel (0) target = $region37
    $region36: #{tpu_custom_call.1} parent=1 // pred_region
      %s1048 = ssub.s32 32, 32
      %1049 = vsyncadd [#allocation4], %s1048
      %s1051 = sshll.u32 [#allocation10], 4
      %s1052 = int_to_ptr.vmem [resolvable:$true] %s1051
      %1054 = dma.vmem_to_hbm [thread:$0]  %s1052, 32, %s4, [#allocation4]
    $region37: #{tpu_custom_call.1} parent=1 // pred_fallthru
      _
    // Predicated region
    $region38: #{tpu_custom_call.1} parent=1 // pred_check
      _
    $region39: #{tpu_custom_call.1} parent=1 // pred_check_branch
      %1056 = sbr.rel (0) target = $region41
    $region40: #{tpu_custom_call.1} parent=1 // pred_region
      %1057 = dma.done [#allocation4], 32
    $region41: #{tpu_custom_call.1} parent=1 // pred_fallthru
      _
    %1058 = vsyncpa [#allocation3], 1
    %1059 = vsyncpa [#allocation6], 1
    %1060 = vsyncpa [#allocation9], 1
    %1061 = vsyncpa [#allocation4], 1

</llo_original>
